<compile_context>
chip_gen: v6e
topology: v6e:2x2x1
jax: 0.10.0
libtpu: 0.0.40
codegen_flags: <defaults>
</compile_context>

<pallas_src>
import functools
import math

import jax
import jax.numpy as jnp
from jax import lax
from jax.experimental import pallas as pl
from jax.experimental.pallas import tpu as pltpu

LANE = 128


def _is_v7x():
    """Best-effort detection of a 2-TensorCore (v7x-class) chip."""
    try:
        kind = jax.devices()[0].device_kind.lower()
    except Exception:
        return False
    return ("v7" in kind) or ("tpu7" in kind) or ("7x" in kind)


def _charbonnier_sum_kernel(x_ref, y_ref, out_ref, acc_ref, *, eps, rows, rb,
                            bpc, needs_mask):
    """Accumulate sqrt((x-y)^2 + eps) into a per-core resident (rb, 128) VMEM scratch.

    Grid = (num_cores, bpc): axis 0 is the (optionally megacore-parallel) core split,
    axis 1 is the reduction over row blocks. On the last reduction step the scratch is
    folded over sublane groups into a tiny (8, 128) output block.
    """
    c = pl.program_id(0)   # core-parallel axis (serial loop of size 1 on v5e/v6e)
    i = pl.program_id(1)   # reduction axis ("arbitrary")

    @pl.when(i == 0)
    def _():
        acc_ref[...] = jnp.zeros_like(acc_ref)

    x = x_ref[...].astype(jnp.float32)
    y = y_ref[...].astype(jnp.float32)
    diff = x - y
    vals = jnp.sqrt(diff * diff + eps)

    if needs_mask:
        # Row-level bound: covers the ragged last block and fully-duplicated (clamped)
        # blocks of the core split. Interior blocks take the unmasked fast path.
        block_start = (c * bpc + i) * rb          # row units -> no i32 overflow hazard
        is_full = block_start + rb <= rows

        @pl.when(is_full)
        def _():
            acc_ref[...] += vals                  # pure VPU, no mask work

        @pl.when(jnp.logical_not(is_full))
        def _():
            row_ids = lax.broadcasted_iota(jnp.int32, (rb, LANE), 0)
            valid = (block_start + row_ids) < rows
            acc_ref[...] += jnp.where(valid, vals, 0.0)
    else:
        acc_ref[...] += vals                      # exact tiling: never any mask work

    @pl.when(i == bpc - 1)
    def _():
        # One cross-sublane fold per core: (rb, 128) -> (8, 128). Tile-aligned reshape
        # (rb is a multiple of 8), so this stays a cheap vreg-add loop.
        out_ref[...] = jnp.sum(acc_ref[...].reshape(rb // 8, 8, LANE), axis=0)


def _charbonnier_sum_2d(x2, y2, eps, row_block, num_cores):
    """Sum of sqrt((x-y)^2 + eps) over a lane-dense (rows, 128) slab via Pallas."""
    rows = x2.shape[0]

    # Dtype-aware sublane packing: f32 -> 8, bf16 -> 16, int8/fp8 -> 32.
    itemsize = jnp.dtype(x2.dtype).itemsize
    packing = max(8, 32 // max(itemsize, 1))

    rb = min(row_block, -(-rows // packing) * packing)
    rb = -(-rb // packing) * packing

    blocks_total = -(-rows // rb)
    bpc = -(-blocks_total // num_cores)           # blocks per core
    grid = (num_cores, bpc)
    needs_mask = (num_cores * bpc * rb) != rows   # exact tiling -> no mask code at all

    def in_index_map(c, i):
        # Clamp so duplicated trailing (c, i) pairs re-read the last valid block
        # (their contribution is zeroed by the in-kernel row mask) instead of going OOB.
        return (jnp.minimum(c * bpc + i, blocks_total - 1), 0)

    in_spec = pl.BlockSpec((rb, LANE), in_index_map)
    # One tiny resident partial-sum block per core; index map ignores the reduction axis.
    out_spec = pl.BlockSpec((8, LANE), lambda c, i: (c, 0))

    kernel = functools.partial(
        _charbonnier_sum_kernel, eps=float(eps), rows=rows, rb=rb, bpc=bpc,
        needs_mask=needs_mask)

    partials = pl.pallas_call(
        kernel,
        out_shape=jax.ShapeDtypeStruct((num_cores * 8, LANE), jnp.float32),
        grid_spec=pltpu.PrefetchScalarGridSpec(
            num_scalar_prefetch=0,
            grid=grid,
            in_specs=[in_spec, in_spec],
            out_specs=out_spec,
            scratch_shapes=[pltpu.VMEM((rb, LANE), jnp.float32)],
        ),
        compiler_params=pltpu.CompilerParams(
            # NOTE: plain "parallel" relies on megacore sharding on v7x; if profiling
            # shows no 2-TC split there, switch the first axis to pltpu.CORE_PARALLEL.
            dimension_semantics=("parallel", "arbitrary"),
            vmem_limit_bytes=48 * 1024 * 1024,
        ),
    )(x2, y2)

    # Tiny final reduction (num_cores * 8 * 128 elements).
    return jnp.sum(partials)


def charbonnier_loss_pallas(x, y, eps=1e-6, row_block=None, num_cores=None):
    """CharbonnierLoss: mean(sqrt((x - y)^2 + eps)) over all elements."""
    assert x.shape == y.shape, (x.shape, y.shape)

    if row_block is None or num_cores is None:
        v7 = _is_v7x()
        if row_block is None:
            # v7x: bigger blocks re-amortize per-step overhead against 3.2 TB/s HBM
            # (~20 MiB footprint, well inside 64 MiB VMEM). Elsewhere the roofline
            # plateaus by ~2048 rows.
            row_block = 8192 if v7 else 2048
        if num_cores is None:
            # Only split the grid across cores on 2-TC chips; a 2-way split on a
            # single-TC chip just duplicates one block of HBM traffic.
            num_cores = 2 if v7 else 1

    n = math.prod(x.shape)
    x_f = x.reshape(-1)
    y_f = y.reshape(-1)

    rows = n // LANE
    n_main = rows * LANE

    total = jnp.float32(0.0)
    if rows > 0:
        x2 = lax.slice(x_f, (0,), (n_main,)).reshape(rows, LANE)
        y2 = lax.slice(y_f, (0,), (n_main,)).reshape(rows, LANE)
        total = total + _charbonnier_sum_2d(x2, y2, eps, row_block, num_cores)
    if n_main < n:
        # <128-element lane tail handled in plain jnp (avoids jnp.pad full-array copies).
        dx = x_f[n_main:].astype(jnp.float32) - y_f[n_main:].astype(jnp.float32)
        total = total + jnp.sum(jnp.sqrt(dx * dx + jnp.float32(eps)))

    return total / jnp.float32(n)


@functools.partial(jax.jit, static_argnames=("now_training",))
def contextual_loss_vrt_forward(gt_clean_image, clean_image_estimate,
                                now_training=False):
    """Forward pass of contextual_loss_VRT. Returns total_loss (outputs_dict passthrough omitted)."""
    if now_training:
        # TODO(synk): VRT_ContextualLoss (VGG19 relu5_4 features + contextual similarity)
        # needs pretrained VGG weights; no clean Pallas equivalent.
        raise NotImplementedError("training-mode VRT contextual loss (VGG-based) not implemented")
    # Eval path: CharbonnierLoss(clean_image_estimate, gt_clean_image) * 1
    # TODO(synk): eps follows the standard TrainingCore CharbonnierLoss default (1e-6).
    total_loss = charbonnier_loss_pallas(clean_image_estimate, gt_clean_image, eps=1e-6) * 1.0
    return total_loss


if __name__ == "__main__":
    key = jax.random.PRNGKey(0)
    k1, k2 = jax.random.split(key)

    # (B, T, C, H, W) — VRT-style 5D video tensors, small shapes.
    B, T, C, H, W = 2, 4, 3, 16, 16
    gt_clean_image = jax.random.uniform(k1, (B, T, C, H, W), jnp.float32)
    model_output = gt_clean_image + 0.05 * jax.random.normal(
        k2, (B, T, C, H, W), jnp.float32)

    total_loss = contextual_loss_vrt_forward(
        gt_clean_image, model_output, now_training=False)
    total_loss = jax.block_until_ready(total_loss)

    # lightweight sanity check against plain-JAX reference (CharbonnierLoss, eps=1e-6)
    diff = model_output.astype(jnp.float32) - gt_clean_image.astype(jnp.float32)
    ref = jnp.mean(jnp.sqrt(diff * diff + 1e-6))
    assert jnp.allclose(total_loss, ref, rtol=1e-5, atol=1e-6), (total_loss, ref)

    print("KERNEL_OK")
</pallas_src>

<mosaic_0001>
module attributes {stable_mosaic.version = 11 : i64} {
  func.func @_charbonnier_sum_kernel(%arg0: i32, %arg1: i32, %arg2: memref<48x128xf32, #tpu.memory_space<vmem>>, %arg3: memref<48x128xf32, #tpu.memory_space<vmem>>, %arg4: memref<8x128xf32, #tpu.memory_space<vmem>>, %arg5: memref<48x128xf32, #tpu.memory_space<vmem>>) attributes {dimension_semantics = [#tpu.dimension_semantics<parallel>, #tpu.dimension_semantics<arbitrary>], iteration_bounds = array<i64: 1, 1>, scalar_prefetch = 0 : i64, scratch_operands = 1 : i64, tpu.core_type = #tpu.core_type<tc>, window_params = [{transform_indices = @transform_0, window_bounds = array<i64: 48, 128>}, {transform_indices = @transform_1, window_bounds = array<i64: 48, 128>}, {transform_indices = @transform_2, window_bounds = array<i64: 8, 128>}]} {
    %c0_i32 = arith.constant 0 : i32
    %0 = arith.cmpi eq, %arg1, %c0_i32 : i32
    %1 = arith.extui %0 : i1 to i32
    %c0_i32_0 = arith.constant 0 : i32
    %2 = arith.cmpi ne, %1, %c0_i32_0 : i32
    scf.if %2 {
      %cst_10 = arith.constant 0.000000e+00 : f32
      %16 = vector.broadcast %cst_10 : f32 to vector<48x128xf32>
      %c0_11 = arith.constant 0 : index
      %c0_12 = arith.constant 0 : index
      %17 = vector.load %arg5[%c0_11, %c0_12] : memref<48x128xf32, #tpu.memory_space<vmem>>, vector<48x128xf32>
      tpu.vector_store %arg5[%c0_11, %c0_12], %16 {strides = array<i32>} : memref<48x128xf32, #tpu.memory_space<vmem>>, vector<48x128xf32>,
    } else {
    }
    %c0 = arith.constant 0 : index
    %c0_1 = arith.constant 0 : index
    %3 = vector.load %arg2[%c0, %c0_1] : memref<48x128xf32, #tpu.memory_space<vmem>>, vector<48x128xf32>
    %c0_2 = arith.constant 0 : index
    %c0_3 = arith.constant 0 : index
    %4 = vector.load %arg3[%c0_2, %c0_3] : memref<48x128xf32, #tpu.memory_space<vmem>>, vector<48x128xf32>
    %5 = arith.subf %3, %4 : vector<48x128xf32>
    %6 = arith.mulf %5, %5 : vector<48x128xf32>
    %cst = arith.constant 9.99999997E-7 : f32
    %7 = vector.broadcast %cst : f32 to vector<48x128xf32>
    %8 = arith.addf %6, %7 : vector<48x128xf32>
    %9 = math.sqrt %8 : vector<48x128xf32>
    %c0_4 = arith.constant 0 : index
    %c0_5 = arith.constant 0 : index
    %10 = vector.load %arg5[%c0_4, %c0_5] : memref<48x128xf32, #tpu.memory_space<vmem>>, vector<48x128xf32>
    %11 = arith.addf %10, %9 : vector<48x128xf32>
    %c0_6 = arith.constant 0 : index
    %c0_7 = arith.constant 0 : index
    %12 = vector.load %arg5[%c0_6, %c0_7] : memref<48x128xf32, #tpu.memory_space<vmem>>, vector<48x128xf32>
    tpu.vector_store %arg5[%c0_6, %c0_7], %11 {strides = array<i32>} : memref<48x128xf32, #tpu.memory_space<vmem>>, vector<48x128xf32>,
    %c0_i32_8 = arith.constant 0 : i32
    %13 = arith.cmpi eq, %arg1, %c0_i32_8 : i32
    %14 = arith.extui %13 : i1 to i32
    %c0_i32_9 = arith.constant 0 : i32
    %15 = arith.cmpi ne, %14, %c0_i32_9 : i32
    scf.if %15 {
      %c0_10 = arith.constant 0 : index
      %c0_11 = arith.constant 0 : index
      %16 = vector.load %arg5[%c0_10, %c0_11] : memref<48x128xf32, #tpu.memory_space<vmem>>, vector<48x128xf32>
      %17 = vector.shape_cast %16 : vector<48x128xf32> to vector<6x8x128xf32>
      %cst_12 = arith.constant dense<0.000000e+00> : vector<8x128xf32>
      %18 = vector.multi_reduction <add>, %17, %cst_12 [0] : vector<6x8x128xf32> to vector<8x128xf32>
      %c0_13 = arith.constant 0 : index
      %c0_14 = arith.constant 0 : index
      %19 = vector.load %arg4[%c0_13, %c0_14] : memref<8x128xf32, #tpu.memory_space<vmem>>, vector<8x128xf32>
      tpu.vector_store %arg4[%c0_13, %c0_14], %18 {strides = array<i32>} : memref<8x128xf32, #tpu.memory_space<vmem>>, vector<8x128xf32>,
    } else {
    }
    return
  }
  func.func @transform_0(%arg0: i32, %arg1: i32) -> (i32, i32) {
    %c1_i32 = arith.constant 1 : i32
    %0 = arith.muli %arg0, %c1_i32 : i32
    %1 = arith.addi %0, %arg1 : i32
    %c0_i32 = arith.constant 0 : i32
    %2 = arith.minsi %1, %c0_i32 : i32
    %c0_i32_0 = arith.constant 0 : i32
    %c0_i32_1 = arith.constant 0 : i32
    return %2, %c0_i32_0 : i32, i32
  }
  func.func @transform_1(%arg0: i32, %arg1: i32) -> (i32, i32) {
    %c1_i32 = arith.constant 1 : i32
    %0 = arith.muli %arg0, %c1_i32 : i32
    %1 = arith.addi %0, %arg1 : i32
    %c0_i32 = arith.constant 0 : i32
    %2 = arith.minsi %1, %c0_i32 : i32
    %c0_i32_0 = arith.constant 0 : i32
    %c0_i32_1 = arith.constant 0 : i32
    return %2, %c0_i32_0 : i32, i32
  }
  func.func @transform_2(%arg0: i32, %arg1: i32) -> (i32, i32) {
    %c0_i32 = arith.constant 0 : i32
    %c0_i32_0 = arith.constant 0 : i32
    return %arg0, %c0_i32 : i32, i32
  }
}

</mosaic_0001>

<llo_original>
// kernel: contextual_loss_vrt_forward.1
$region0: #{contextual_loss_vrt_forward.1}
  #allocation0 [shape = 'u32[]', space=smem, size = 0x4, offset = 0x4, fixed_abs, tag = 'smem constant byte address 0x4 - core index']
  #allocation1 [shape = 'u32[144,128]{1,0:T(1,128)}', space=vmem, size = 0x12000, scoped, tag = 'internal scratch']
  #allocation2 [shape = 'f32[48,128]{1,0:T(8,128)}', space=vmem, size = 0x6000, scoped, tag = 'scratch operand']
  %s0 = inlined_call_operand.vmem [shape: f32[48,128], index: 0, kind: input, shape index: {}]
  %s1 = inlined_call_operand.vmem [shape: f32[48,128], index: 1, kind: input, shape index: {}]
  %s2 = inlined_call_operand.vmem [shape: f32[8,128], index: 2, kind: output, shape index: {}]
  %s3 = sld [smem:[#allocation0]]
  $region26: #{contextual_loss_vrt_forward.1} parent=0
    _
  %s5 = ssub.s32 1, %s3
  %s6 = scalar_select 0, %s5, %s3
  // Predicated region
  $region2: #{contextual_loss_vrt_forward.1} parent=0 // pred_check
    _
  $region3: #{contextual_loss_vrt_forward.1} parent=0 // pred_check_branch
    %8 = sbr.rel (0) target = $region5
  $region4: #{contextual_loss_vrt_forward.1} parent=0 // pred_region
    %s9 = sadd.s32 0, 0
    %p10 = scmp.lt.s32.totalorder %s9, 0
    %s11 = scalar_select %p10, %s9, 0
    %s12 = smul.u32 6, %s11
    %p13 = scmp.lt.s32.totalorder %s12, 5
    %s14 = scalar_select %p13, %s12, 5
    %s15 = smul.addr %s14, 8
    %s16 = scalar_lea.vmem %s0, %s15
    %s17 = sadd.s32 0, 0
    %p18 = scmp.lt.s32.totalorder %s17, 0
    %s19 = scalar_select %p18, %s17, 0
    %s20 = smul.u32 6, %s19
  $region5: #{contextual_loss_vrt_forward.1} parent=0 // pred_fallthru
    _
  // Predicated region
  $region6: #{contextual_loss_vrt_forward.1} parent=0 // pred_check
    _
  $region7: #{contextual_loss_vrt_forward.1} parent=0 // pred_check_branch
    %22 = sbr.rel (0) target = $region9
  $region8: #{contextual_loss_vrt_forward.1} parent=0 // pred_region
    %s23 = sadd.s32 0, 0
    %p24 = scmp.lt.s32.totalorder %s23, 0
    %s25 = scalar_select %p24, %s23, 0
    %s26 = smul.u32 6, %s25
    %p27 = scmp.lt.s32.totalorder %s26, 5
    %s28 = scalar_select %p27, %s26, 5
    %s29 = smul.addr %s28, 8
    %s30 = scalar_lea.vmem %s1, %s29
    %s31 = sadd.s32 0, 0
    %p32 = scmp.lt.s32.totalorder %s31, 0
    %s33 = scalar_select %p32, %s31, 0
    %s34 = smul.u32 6, %s33
  $region9: #{contextual_loss_vrt_forward.1} parent=0 // pred_fallthru
    _
  %s35 = sadd.s32 0, 0
  %p36 = scmp.lt.s32.totalorder %s35, 0
  %s37 = scalar_select %p36, %s35, 0
  %s38 = smul.u32 6, %s37
  %p39 = scmp.lt.s32.totalorder %s38, 5
  %s40 = scalar_select %p39, %s38, 5
  %s41 = smul.addr %s40, 8
  %s42 = scalar_lea.vmem %s0, %s41
  %s43 = sadd.s32 0, 0
  %p44 = scmp.lt.s32.totalorder %s43, 0
  %s45 = scalar_select %p44, %s43, 0
  %s46 = smul.u32 6, %s45
  %p47 = scmp.lt.s32.totalorder %s46, 5
  %s48 = scalar_select %p47, %s46, 5
  %s49 = smul.addr %s48, 8
  %s50 = scalar_lea.vmem %s1, %s49
  %s51 = sadd.s32 0, 0
  %p52 = scmp.lt.s32.totalorder %s51, 0
  %s53 = scalar_select %p52, %s51, 0
  %s54 = smul.u32 6, %s53
  %p55 = scmp.lt.s32.totalorder %s54, 5
  %s56 = scalar_select %p55, %s54, 5
  %s57 = smul.addr %s56, 8
  %s58 = scalar_lea.vmem %s0, %s57
  %s59 = sadd.s32 0, 0
  %p60 = scmp.lt.s32.totalorder %s59, 0
  %s61 = scalar_select %p60, %s59, 0
  %s62 = smul.u32 6, %s61
  %s63 = sadd.s32 0, 0
  %p64 = scmp.lt.s32.totalorder %s63, 0
  %s65 = scalar_select %p64, %s63, 0
  %s66 = smul.u32 6, %s65
  %p67 = scmp.lt.s32.totalorder %s66, 5
  %s68 = scalar_select %p67, %s66, 5
  %s69 = smul.addr %s68, 8
  %s70 = scalar_lea.vmem %s1, %s69
  %s71 = sadd.s32 0, 0
  %p72 = scmp.lt.s32.totalorder %s71, 0
  %s73 = scalar_select %p72, %s71, 0
  %s74 = smul.u32 6, %s73
  %p75 = scmp.eq.s32.totalorder 0, 0
  // Predicated region
  $region10: #{contextual_loss_vrt_forward.1} parent=0 // pred_check
    %p76 = pneg %p75
  $region11: #{contextual_loss_vrt_forward.1} parent=0 // pred_check_branch
    %78 = sbr.rel (%p76) target = $region13
  $region12: #{contextual_loss_vrt_forward.1} parent=0 // pred_region
    %79 = vst [vmem:[#allocation2] sm:$0xff] 0.0
    %80 = vst [vmem:[#allocation2 + $0x8] sm:$0xff] 0.0
    %81 = vst [vmem:[#allocation2 + $0x10] sm:$0xff] 0.0
    %82 = vst [vmem:[#allocation2 + $0x18] sm:$0xff] 0.0
    %83 = vst [vmem:[#allocation2 + $0x20] sm:$0xff] 0.0
    %84 = vst [vmem:[#allocation2 + $0x28] sm:$0xff] 0.0
  $region13: #{contextual_loss_vrt_forward.1} parent=0 // pred_fallthru
    _
  %v85 = vld [vmem:[%s58] sm:$0xff]
  %v86 = vld [vmem:[%s58 + $0x8] sm:$0xff]
  %v87 = vld [vmem:[%s58 + $0x10] sm:$0xff]
  %v88 = vld [vmem:[%s58 + $0x18] sm:$0xff]
  %v89 = vld [vmem:[%s58 + $0x20] sm:$0xff]
  %v90 = vld [vmem:[%s58 + $0x28] sm:$0xff]
  %v91 = vld [vmem:[%s70] sm:$0xff]
  %v92 = vld [vmem:[%s70 + $0x8] sm:$0xff]
  %v93 = vld [vmem:[%s70 + $0x10] sm:$0xff]
  %v94 = vld [vmem:[%s70 + $0x18] sm:$0xff]
  %v95 = vld [vmem:[%s70 + $0x20] sm:$0xff]
  %v96 = vld [vmem:[%s70 + $0x28] sm:$0xff]
  %v97 = vsub.f32 %v85, %v91
  %v98 = vsub.f32 %v86, %v92
  %v99 = vsub.f32 %v87, %v93
  %v100 = vsub.f32 %v88, %v94
  %v101 = vsub.f32 %v89, %v95
  %v102 = vsub.f32 %v90, %v96
  %v103 = vmul.f32 %v97, %v97
  %v104 = vmul.f32 %v98, %v98
  %v105 = vmul.f32 %v99, %v99
  %v106 = vmul.f32 %v100, %v100
  %v107 = vmul.f32 %v101, %v101
  %v108 = vmul.f32 %v102, %v102
  %v109 = vadd.f32 %v103, 1e-06
  %v110 = vadd.f32 %v104, 1e-06
  %v111 = vadd.f32 %v105, 1e-06
  %v112 = vadd.f32 %v106, 1e-06
  %v113 = vadd.f32 %v107, 1e-06
  %v114 = vadd.f32 %v108, 1e-06
  %v115 = vrsqrt.pop %v109
  %v116 = vmul.f32 %v109, %v115
  %vm117 = vcmp.eq.f32.partialorder %v109, inf
  %v118 = vsel %vm117, %v109, %v116
  %vm119 = vcmp.eq.f32.partialorder %v109, 0.0
  %v120 = vand.u32 %v109, 2147483648
  %v121 = vsel %vm119, %v120, %v118
  %v122 = vrsqrt.pop %v110
  %v123 = vmul.f32 %v110, %v122
  %vm124 = vcmp.eq.f32.partialorder %v110, inf
  %v125 = vsel %vm124, %v110, %v123
  %vm126 = vcmp.eq.f32.partialorder %v110, 0.0
  %v127 = vand.u32 %v110, 2147483648
  %v128 = vsel %vm126, %v127, %v125
  %v129 = vrsqrt.pop %v111
  %v130 = vmul.f32 %v111, %v129
  %vm131 = vcmp.eq.f32.partialorder %v111, inf
  %v132 = vsel %vm131, %v111, %v130
  %vm133 = vcmp.eq.f32.partialorder %v111, 0.0
  %v134 = vand.u32 %v111, 2147483648
  %v135 = vsel %vm133, %v134, %v132
  %v136 = vrsqrt.pop %v112
  %v137 = vmul.f32 %v112, %v136
  %vm138 = vcmp.eq.f32.partialorder %v112, inf
  %v139 = vsel %vm138, %v112, %v137
  %vm140 = vcmp.eq.f32.partialorder %v112, 0.0
  %v141 = vand.u32 %v112, 2147483648
  %v142 = vsel %vm140, %v141, %v139
  %v143 = vrsqrt.pop %v113
  %v144 = vmul.f32 %v113, %v143
  %vm145 = vcmp.eq.f32.partialorder %v113, inf
  %v146 = vsel %vm145, %v113, %v144
  %vm147 = vcmp.eq.f32.partialorder %v113, 0.0
  %v148 = vand.u32 %v113, 2147483648
  %v149 = vsel %vm147, %v148, %v146
  %v150 = vrsqrt.pop %v114
  %v151 = vmul.f32 %v114, %v150
  %vm152 = vcmp.eq.f32.partialorder %v114, inf
  %v153 = vsel %vm152, %v114, %v151
  %vm154 = vcmp.eq.f32.partialorder %v114, 0.0
  %v155 = vand.u32 %v114, 2147483648
  %v156 = vsel %vm154, %v155, %v153
  %v157 = vld [vmem:[#allocation2] sm:$0xff]
  %v158 = vld [vmem:[#allocation2 + $0x8] sm:$0xff]
  %v159 = vld [vmem:[#allocation2 + $0x10] sm:$0xff]
  %v160 = vld [vmem:[#allocation2 + $0x18] sm:$0xff]
  %v161 = vld [vmem:[#allocation2 + $0x20] sm:$0xff]
  %v162 = vld [vmem:[#allocation2 + $0x28] sm:$0xff]
  %v163 = vadd.f32 %v157, %v121
  %v164 = vadd.f32 %v158, %v128
  %v165 = vadd.f32 %v159, %v135
  %v166 = vadd.f32 %v160, %v142
  %v167 = vadd.f32 %v161, %v149
  %v168 = vadd.f32 %v162, %v156
  %169 = vst [vmem:[#allocation2] sm:$0xff] %v163
  %170 = vst [vmem:[#allocation2 + $0x8] sm:$0xff] %v164
  %171 = vst [vmem:[#allocation2 + $0x10] sm:$0xff] %v165
  %172 = vst [vmem:[#allocation2 + $0x18] sm:$0xff] %v166
  %173 = vst [vmem:[#allocation2 + $0x20] sm:$0xff] %v167
  %174 = vst [vmem:[#allocation2 + $0x28] sm:$0xff] %v168
  // Predicated region
  $region14: #{contextual_loss_vrt_forward.1} parent=0 // pred_check
    %p175 = pneg %p75
  $region15: #{contextual_loss_vrt_forward.1} parent=0 // pred_check_branch
    %177 = sbr.rel (%p175) target = $region17
  $region16: #{contextual_loss_vrt_forward.1} parent=0 // pred_region
    %v178 = vld [vmem:[#allocation2] sm:$0xff]
    %v179 = vld [vmem:[#allocation2 + $0x8] sm:$0xff]
    %v180 = vld [vmem:[#allocation2 + $0x10] sm:$0xff]
    %v181 = vld [vmem:[#allocation2 + $0x18] sm:$0xff]
    %v182 = vld [vmem:[#allocation2 + $0x20] sm:$0xff]
    %v183 = vld [vmem:[#allocation2 + $0x28] sm:$0xff]
    %v184 = vadd.f32 %v178, %v179
    %v185 = vadd.f32 %v184, %v180
    %v186 = vadd.f32 %v185, %v181
    %v187 = vadd.f32 %v186, %v182
    %v188 = vadd.f32 %v187, %v183
    %189 = vst [vmem:[%s2] sm:$0xff] %v188
  $region17: #{contextual_loss_vrt_forward.1} parent=0 // pred_fallthru
    _
  // Predicated region
  $region18: #{contextual_loss_vrt_forward.1} parent=0 // pred_check
    _
  $region19: #{contextual_loss_vrt_forward.1} parent=0 // pred_check_branch
    %191 = sbr.rel (0) target = $region21
  $region20: #{contextual_loss_vrt_forward.1} parent=0 // pred_region
    _
  $region21: #{contextual_loss_vrt_forward.1} parent=0 // pred_fallthru
    _
  // Predicated region
  $region22: #{contextual_loss_vrt_forward.1} parent=0 // pred_check
    _
  $region23: #{contextual_loss_vrt_forward.1} parent=0 // pred_check_branch
    %193 = sbr.rel (0) target = $region25
  $region24: #{contextual_loss_vrt_forward.1} parent=0 // pred_region
    _
  $region25: #{contextual_loss_vrt_forward.1} parent=0 // pred_fallthru
    _

</llo_original>
